<compile_context>
chip_gen: v6e
topology: v6e:2x2x1
jax: 0.10.0
libtpu: 0.0.40
codegen_flags: <defaults>
</compile_context>

<pallas_src>
import functools

import jax
import jax.numpy as jnp
from jax.experimental import pallas as pl
from jax.experimental.pallas import tpu as pltpu


def _linear_kernel(x_ref, w_ref, b_ref, o_ref):
    """o = x @ w + b  (f32 accumulation on the MXU, cast to output dtype)."""
    # x: (TR, K)  activation tile (bf16 or f32)
    # w: (K, N)   weight, pinned VMEM-resident block (constant index_map)
    # b: (1, N)   bias, f32, pinned
    # o: (TR, N)  output tile
    acc = jnp.dot(x_ref[...], w_ref[...], preferred_element_type=jnp.float32)
    o_ref[...] = (acc + b_ref[...]).astype(o_ref.dtype)


def _round_up(x: int, m: int) -> int:
    return (x + m - 1) // m * m


def _pick_row_tile(rows: int) -> tuple[int, int]:
    """Row-tile size and grid length for the mem-bound batch axis."""
    # Small: one step — the ~0.35 us per-grid-step overhead would dominate.
    if rows <= 1024:
        return rows, 1
    # Large: big tiles amortize per-step overhead (measured mem-bound kernels go
    # ~63% -> ~86% of HBM roofline moving 256 -> 1024-row tiles), but keep >= 2
    # steps so dimension_semantics=("parallel",) shards the batch across both
    # TensorCores on v7x.  Multiple of 8 keeps sublane alignment of the blocks.
    tile = min(2048, _round_up(pl.cdiv(rows, 2), 8))
    return tile, pl.cdiv(rows, tile)


@functools.partial(jax.jit, static_argnames=("cast_inputs_to_bf16",))
def random_network_forward(context, weight, bias, *, cast_inputs_to_bf16=True):
    """context: (B, C); weight: (P, C) torch nn.Linear layout; bias: (P,) -> (B, 1, P)."""
    B, C = context.shape
    P, C_w = weight.shape
    assert C_w == C
    assert bias.shape == (P,)

    out_dtype = context.dtype
    compute_dtype = (
        jnp.bfloat16
        if (cast_inputs_to_bf16 and context.dtype == jnp.float32)
        else context.dtype
    )

    # ---- lane-dense "packed" layout when P < 128 divides 128 -----------------
    G = 128 // P if (P < 128 and 128 % P == 0) else 1
    use_packed = G > 1 and B % G == 0

    if use_packed:
        rows, K, N = B // G, G * C, G * P                 # N == 128 lanes
        x_in = context.reshape(rows, K).astype(compute_dtype)   # metadata reshape + cast
        # Block-diagonal expansion of W^T: out'[r, g*P+p] = sum_k x[r*G+g, k] * W[p, k].
        # TODO(synk): precompute w_in / b_in once at model-load time instead of per call.
        w_in = jnp.kron(jnp.eye(G, dtype=weight.dtype), weight.T).astype(compute_dtype)
        b_in = jnp.tile(bias, G).reshape(1, N).astype(jnp.float32)
    else:
        rows, K, N = B, C, P
        x_in = context.astype(compute_dtype)
        # One-time (C, P) transpose in the wrapper (fuses with the cast) so the
        # pinned weight block is already MXU-oriented inside the kernel.
        w_in = weight.T.astype(compute_dtype)
        b_in = bias.reshape(1, N).astype(jnp.float32)

    tile_rows, steps = _pick_row_tile(rows)

    # VMEM budget: only override the scoped default when the double-buffered
    # tiles could actually bind; cap well below v7x's 64 MiB physical VMEM.
    in_item = jnp.dtype(compute_dtype).itemsize
    out_item = jnp.dtype(out_dtype).itemsize
    tile_bytes = 2 * tile_rows * (K * in_item + N * out_item)   # x + out, double-buffered
    pinned_bytes = 2 * (K * N * in_item + N * 4)                # weight + bias buffers
    vmem_need = tile_bytes + pinned_bytes + (2 << 20)
    vmem_limit = min(vmem_need, 48 << 20) if vmem_need > (16 << 20) else None

    cost = pl.CostEstimate(
        flops=2 * rows * K * N,
        transcendentals=0,
        bytes_accessed=(rows * K * in_item + K * N * in_item + N * 4
                        + rows * N * out_item),
    )

    if use_packed:
        out_shape = jax.ShapeDtypeStruct((rows, N), out_dtype)
        out_spec = pl.BlockSpec((tile_rows, N), lambda i: (i, 0))
    else:
        # Emit the unsqueeze(1) shape directly (unit dim squeezed from the block).
        out_shape = jax.ShapeDtypeStruct((B, 1, P), out_dtype)
        out_spec = pl.BlockSpec((tile_rows, None, P), lambda i: (i, 0, 0))

    out = pl.pallas_call(
        _linear_kernel,
        out_shape=out_shape,
        grid_spec=pltpu.PrefetchScalarGridSpec(
            num_scalar_prefetch=0,
            grid=(steps,),
            in_specs=[
                pl.BlockSpec((tile_rows, K), lambda i: (i, 0)),   # activation tile
                # Weight / bias: constant index_map -> Pallas keeps the block
                # VMEM-resident and skips the re-DMA on every grid step.
                pl.BlockSpec((K, N), lambda i: (0, 0)),
                pl.BlockSpec((1, N), lambda i: (0, 0)),
            ],
            out_specs=out_spec,
        ),
        compiler_params=pltpu.CompilerParams(
            dimension_semantics=("parallel",),
            vmem_limit_bytes=vmem_limit,
        ),
        cost_estimate=cost,
    )(x_in, w_in, b_in)

    if use_packed:
        out = out.reshape(B, 1, P)   # metadata-only: row-major byte-identical
    return out


if __name__ == "__main__":
    # Small, module-consistent shapes.
    batch = 8
    context_length = 32
    prediction_length = 16

    key = jax.random.PRNGKey(0)
    k_w, k_b, k_x = jax.random.split(key, 3)

    # weight ~ U(-1, 1) (matches torch.nn.init.uniform_), bias = default Linear init.
    weight = jax.random.uniform(
        k_w, (prediction_length, context_length), jnp.float32, -1.0, 1.0
    )
    bound = 1.0 / float(context_length) ** 0.5
    bias = jax.random.uniform(k_b, (prediction_length,), jnp.float32, -bound, bound)
    context = jax.random.normal(k_x, (batch, context_length), jnp.float32)

    # Fast path: bf16 inputs, f32 accumulate (the only deviation from f32 torch math).
    out = random_network_forward(context, weight, bias, cast_inputs_to_bf16=True)
    out = jax.block_until_ready(out)
    assert out.shape == (batch, 1, prediction_length), out.shape

    # Reference with matched bf16 input rounding: should agree to f32-accum precision.
    xb = context.astype(jnp.bfloat16)
    wb = weight.astype(jnp.bfloat16)
    ref_bf16 = (jnp.dot(xb, wb.T, preferred_element_type=jnp.float32) + bias)[:, None, :]
    assert jnp.allclose(out, ref_bf16, atol=1e-4, rtol=1e-4), float(
        jnp.max(jnp.abs(out - ref_bf16))
    )

    # Loose sanity bound vs. the exact-f32 module math (bf16 rounding only).
    ref_f32 = (context @ weight.T + bias)[:, None, :]
    assert float(jnp.max(jnp.abs(out - ref_f32))) < 0.25

    # Exact-semantics path (no bf16 cast) matches the f32 torch math tightly.
    out_f32 = random_network_forward(context, weight, bias, cast_inputs_to_bf16=False)
    out_f32 = jax.block_until_ready(out_f32)
    assert out_f32.shape == (batch, 1, prediction_length)
    assert jnp.allclose(out_f32, ref_f32, atol=1e-3, rtol=1e-3), float(
        jnp.max(jnp.abs(out_f32 - ref_f32))
    )

    print("KERNEL_OK")
</pallas_src>

<mosaic_0001>
module attributes {stable_mosaic.version = 11 : i64} {
  func.func @_linear_kernel(%arg0: i32, %arg1: memref<1x256xbf16, #tpu.memory_space<vmem>>, %arg2: memref<256x128xbf16, #tpu.memory_space<vmem>>, %arg3: memref<1x128xf32, #tpu.memory_space<vmem>>, %arg4: memref<1x128xf32, #tpu.memory_space<vmem>>) attributes {dimension_semantics = [#tpu.dimension_semantics<parallel>], iteration_bounds = array<i64: 1>, scalar_prefetch = 0 : i64, scratch_operands = 0 : i64, tpu.core_type = #tpu.core_type<tc>, window_params = [{transform_indices = @transform_0, window_bounds = array<i64: 1, 256>}, {pipeline_mode = #tpu.pipeline_mode<synchronous>, transform_indices = @transform_1, window_bounds = array<i64: 256, 128>}, {pipeline_mode = #tpu.pipeline_mode<synchronous>, transform_indices = @transform_2, window_bounds = array<i64: 1, 128>}, {transform_indices = @transform_3, window_bounds = array<i64: 1, 128>}]} {
    %c0 = arith.constant 0 : index
    %c0_0 = arith.constant 0 : index
    %0 = vector.load %arg1[%c0, %c0_0] : memref<1x256xbf16, #tpu.memory_space<vmem>>, vector<1x256xbf16>
    %c0_1 = arith.constant 0 : index
    %c0_2 = arith.constant 0 : index
    %1 = vector.load %arg2[%c0_1, %c0_2] : memref<256x128xbf16, #tpu.memory_space<vmem>>, vector<256x128xbf16>
    %cst = arith.constant dense<0.000000e+00> : vector<1x128xf32>
    %2 = tpu.matmul %0, %1, %cst {dimension_numbers = #tpu.dot_dimension_numbers<[1], [0], [0], [1], [0, 0, 1, 1], [], []>} : vector<1x256xbf16>, vector<256x128xbf16>, vector<1x128xf32> -> vector<1x128xf32>
    %c0_3 = arith.constant 0 : index
    %c0_4 = arith.constant 0 : index
    %3 = vector.load %arg3[%c0_3, %c0_4] : memref<1x128xf32, #tpu.memory_space<vmem>>, vector<1x128xf32>
    %4 = arith.addf %2, %3 : vector<1x128xf32>
    %c0_5 = arith.constant 0 : index
    %c0_6 = arith.constant 0 : index
    %5 = vector.load %arg4[%c0_5, %c0_6] : memref<1x128xf32, #tpu.memory_space<vmem>>, vector<1x128xf32>
    tpu.vector_store %arg4[%c0_5, %c0_6], %4 {strides = array<i32>} : memref<1x128xf32, #tpu.memory_space<vmem>>, vector<1x128xf32>,
    return
  }
  func.func @transform_0(%arg0: i32) -> (i32, i32) {
    %c0_i32 = arith.constant 0 : i32
    %c0_i32_0 = arith.constant 0 : i32
    return %arg0, %c0_i32 : i32, i32
  }
  func.func @transform_1(%arg0: i32) -> (i32, i32) {
    %c0_i32 = arith.constant 0 : i32
    %c0_i32_0 = arith.constant 0 : i32
    %c0_i32_1 = arith.constant 0 : i32
    return %c0_i32, %c0_i32_0 : i32, i32
  }
  func.func @transform_2(%arg0: i32) -> (i32, i32) {
    %c0_i32 = arith.constant 0 : i32
    %c0_i32_0 = arith.constant 0 : i32
    %c0_i32_1 = arith.constant 0 : i32
    return %c0_i32, %c0_i32_0 : i32, i32
  }
  func.func @transform_3(%arg0: i32) -> (i32, i32) {
    %c0_i32 = arith.constant 0 : i32
    %c0_i32_0 = arith.constant 0 : i32
    return %arg0, %c0_i32 : i32, i32
  }
}

</mosaic_0001>

<llo_original>
// kernel: tile.8
$region0: #{tile.8}
  #allocation0 [shape = 's32[1]{0}', space=sflag, size = 0x4, scoped, tag = 'scoped memory for tile.8']
  %s0 = inlined_call_operand.vmem [shape: f32[16], index: 0, kind: input, shape index: {}]
  %s1 = inlined_call_operand.vmem [shape: f32[8,16], index: 1, kind: output, shape index: {}]
  // Predicated region
  $region2: #{tile.8} parent=0 // pred_check
    _
  $region3: #{tile.8} parent=0 // pred_check_branch
    %3 = sbr.rel (0) target = $region5
  $region4: #{tile.8} parent=0 // pred_region
    _
  $region5: #{tile.8} parent=0 // pred_fallthru
    _
  %v4 = vld [vmem:[%s0] ss:$0 sm:$0xff]
  %5 = vst [vmem:[%s1] sm:$0xff] %v4

// kernel: tile.9
$region0: #{tile.9}
  %s0 = inlined_call_operand.vmem [shape: f32[8,16], index: 0, kind: input, shape index: {}]
  %s1 = inlined_call_operand.vmem [shape: f32[1,128], index: 1, kind: output, shape index: {}]
  $region1: #{tile.9} parent=0
    #allocation0 [shape = 'u8[4096]{0}', space=vmem, size = 0x1000, scoped, tag = 'scoped mem for output reshape']
    %v2 = vld [vmem:[%s0] sm:$0x1]
    %vm3 = vcmask 130048
    %4 = vst.msk [vmem:[#allocation0] sm:$0x1] %vm3, %v2
    %s5 = scalar_lea.vmem %s0, 7
    %v6 = vld [vmem:[%s5] sm:$0x1]
    %7 = vrot.lane.b32.xlu0 %v6, 112
    %v8 = vpop.permute.xlu0 %7
    %vm9 = vcmask 1048448
    %10 = vst.msk [vmem:[#allocation0] sm:$0x1] %vm9, %v8
    %s11 = scalar_lea.vmem %s0, 6
    %v12 = vld [vmem:[%s11] sm:$0x1]
    %13 = vrot.lane.b32.xlu0 %v12, 96
    %v14 = vpop.permute.xlu0 %13
    %vm15 = vcmask 917248
    %16 = vst.msk [vmem:[#allocation0] sm:$0x1] %vm15, %v14
    %s17 = scalar_lea.vmem %s0, 5
    %v18 = vld [vmem:[%s17] sm:$0x1]
    %19 = vrot.lane.b32.xlu0 %v18, 80
    %v20 = vpop.permute.xlu0 %19
    %vm21 = vcmask 786048
    %22 = vst.msk [vmem:[#allocation0] sm:$0x1] %vm21, %v20
    %s23 = scalar_lea.vmem %s0, 4
    %v24 = vld [vmem:[%s23] sm:$0x1]
    %25 = vrot.lane.b32.xlu0 %v24, 64
    %v26 = vpop.permute.xlu0 %25
    %vm27 = vcmask 654848
    %28 = vst.msk [vmem:[#allocation0] sm:$0x1] %vm27, %v26
    %s29 = scalar_lea.vmem %s0, 3
    %v30 = vld [vmem:[%s29] sm:$0x1]
    %31 = vrot.lane.b32.xlu0 %v30, 48
    %v32 = vpop.permute.xlu0 %31
    %vm33 = vcmask 523648
    %34 = vst.msk [vmem:[#allocation0] sm:$0x1] %vm33, %v32
    %s35 = scalar_lea.vmem %s0, 2
    %v36 = vld [vmem:[%s35] sm:$0x1]
    %37 = vrot.lane.b32.xlu0 %v36, 32
    %v38 = vpop.permute.xlu0 %37
    %vm39 = vcmask 392448
    %40 = vst.msk [vmem:[#allocation0] sm:$0x1] %vm39, %v38
    %s41 = scalar_lea.vmem %s0, 1
    %v42 = vld [vmem:[%s41] sm:$0x1]
    %43 = vrot.lane.b32.xlu0 %v42, 16
    %v44 = vpop.permute.xlu0 %43
    %vm45 = vcmask 261248
    %46 = vst.msk [vmem:[#allocation0] sm:$0x1] %vm45, %v44
    %s48 = sshll.u32 1, 1
    %s49 = ssub.s32 %s48, 1
    %v51 = vld [vmem:[#allocation0] sm:%s49]
    %s52 = sshll.u32 1, 1
    %s53 = ssub.s32 %s52, 1
    %54 = vst [vmem:[%s1] sm:%s53] %v51

// kernel: random_network_forward.1
$region0: #{random_network_forward.1}
  #allocation0 [shape = 'u32[]', space=smem, size = 0x4, offset = 0x4, fixed_abs, tag = 'smem constant byte address 0x4 - core index']
  #allocation1 [shape = 'u32[144,128]{1,0:T(1,128)}', space=vmem, size = 0x12000, scoped, tag = 'internal scratch']
  %s0 = inlined_call_operand.vmem [shape: bf16[1,256], index: 0, kind: input, shape index: {}]
  %s1 = inlined_call_operand.vmem [shape: bf16[256,128], index: 1, kind: input, shape index: {}]
  %s2 = inlined_call_operand.vmem [shape: f32[1,128], index: 2, kind: input, shape index: {}]
  %s3 = inlined_call_operand.vmem [shape: f32[1,128], index: 3, kind: output, shape index: {}]
  %s4 = sld [smem:[#allocation0]]
  $region22: #{random_network_forward.1} parent=0
    _
  %s6 = ssub.s32 1, %s4
  %s7 = scalar_select 0, %s6, %s4
  // Predicated region
  $region2: #{random_network_forward.1} parent=0 // pred_check
    _
  $region3: #{random_network_forward.1} parent=0 // pred_check_branch
    %9 = sbr.rel (0) target = $region5
  $region4: #{random_network_forward.1} parent=0 // pred_region
    _
  $region5: #{random_network_forward.1} parent=0 // pred_fallthru
    _
  // Predicated region
  $region6: #{random_network_forward.1} parent=0 // pred_check
    _
  $region7: #{random_network_forward.1} parent=0 // pred_check_branch
    %11 = sbr.rel (0) target = $region9
  $region8: #{random_network_forward.1} parent=0 // pred_region
    _
  $region9: #{random_network_forward.1} parent=0 // pred_fallthru
    _
  // Predicated region
  $region10: #{random_network_forward.1} parent=0 // pred_check
    _
  $region11: #{random_network_forward.1} parent=0 // pred_check_branch
    %13 = sbr.rel (0) target = $region13
  $region12: #{random_network_forward.1} parent=0 // pred_region
    _
  $region13: #{random_network_forward.1} parent=0 // pred_fallthru
    _
  %v15 = vld [vmem:[%s0] sm:$0x3]
  %v16 = vld [vmem:[%s1] sm:$0xf]
  %v17 = vld [vmem:[%s1 + $0x4] sm:$0xf]
  %v18 = vld [vmem:[%s1 + $0x8] sm:$0xf]
  %v19 = vld [vmem:[%s1 + $0xc] sm:$0xf]
  %v20 = vld [vmem:[%s1 + $0x10] sm:$0xf]
  %v21 = vld [vmem:[%s1 + $0x14] sm:$0xf]
  %v22 = vld [vmem:[%s1 + $0x18] sm:$0xf]
  %v23 = vld [vmem:[%s1 + $0x1c] sm:$0xf]
  %v24 = vld [vmem:[%s1 + $0x20] sm:$0xf]
  %v25 = vld [vmem:[%s1 + $0x24] sm:$0xf]
  %v26 = vld [vmem:[%s1 + $0x28] sm:$0xf]
  %v27 = vld [vmem:[%s1 + $0x2c] sm:$0xf]
  %v28 = vld [vmem:[%s1 + $0x30] sm:$0xf]
  %v29 = vld [vmem:[%s1 + $0x34] sm:$0xf]
  %v30 = vld [vmem:[%s1 + $0x38] sm:$0xf]
  %v31 = vld [vmem:[%s1 + $0x3c] sm:$0xf]
  %v32 = vld [vmem:[%s1 + $0x40] sm:$0xf]
  %v33 = vld [vmem:[%s1 + $0x44] sm:$0xf]
  %v34 = vld [vmem:[%s1 + $0x48] sm:$0xf]
  %v35 = vld [vmem:[%s1 + $0x4c] sm:$0xf]
  %v36 = vld [vmem:[%s1 + $0x50] sm:$0xf]
  %v37 = vld [vmem:[%s1 + $0x54] sm:$0xf]
  %v38 = vld [vmem:[%s1 + $0x58] sm:$0xf]
  %v39 = vld [vmem:[%s1 + $0x5c] sm:$0xf]
  %v40 = vld [vmem:[%s1 + $0x60] sm:$0xf]
  %v41 = vld [vmem:[%s1 + $0x64] sm:$0xf]
  %v42 = vld [vmem:[%s1 + $0x68] sm:$0xf]
  %v43 = vld [vmem:[%s1 + $0x6c] sm:$0xf]
  %v44 = vld [vmem:[%s1 + $0x70] sm:$0xf]
  %v45 = vld [vmem:[%s1 + $0x74] sm:$0xf]
  %v46 = vld [vmem:[%s1 + $0x78] sm:$0xf]
  %v47 = vld [vmem:[%s1 + $0x7c] sm:$0xf]
  %v48 = vld [vmem:[%s2] sm:$0x1]
  %v51 = vunpack.c.l.s4 1966171168
  %v52 = vunpack.c.0.s8 %v51
  %v53 = vlaneseq
  %v54 = vshrl.u32 %v53, 7
  %v55 = vsub.s32 %v52, %v54
  %v56 = vrot.slane %v15, %v55
  %v57 = vcombine.high %v56, %v56
  %v59 = vunpack.c.l.s4 1966171168
  %v60 = vunpack.c.0.s8 %v59
  %v61 = vlaneseq
  %v62 = vshrl.u32 %v61, 7
  %v63 = vsub.s32 %v60, %v62
  %v64 = vrot.slane %v56, %v63
  %v66 = vunpack.c.l.s4 1966171168
  %v67 = vunpack.c.0.s8 %v66
  %v68 = vlaneseq
  %v69 = vshrl.u32 %v68, 7
  %v70 = vsub.s32 %v67, %v69
  %v71 = vrot.slane %v57, %v70
  %v106 = vunpack.c.l.b16 %v16
  %v107 = vunpack.c.l.b16 %v17
  %v108 = vunpack.c.l.b16 %v18
  %v109 = vunpack.c.l.b16 %v19
  %v110 = vunpack.c.l.b16 %v20
  %v111 = vunpack.c.l.b16 %v21
  %v112 = vunpack.c.l.b16 %v22
  %v113 = vunpack.c.l.b16 %v23
  %v114 = vunpack.c.l.b16 %v24
  %v115 = vunpack.c.l.b16 %v25
  %v116 = vunpack.c.l.b16 %v26
  %v117 = vunpack.c.l.b16 %v27
  %v118 = vunpack.c.l.b16 %v28
  %v119 = vunpack.c.l.b16 %v29
  %v120 = vunpack.c.l.b16 %v30
  %v121 = vunpack.c.l.b16 %v31
  %v122 = vunpack.c.l.b16 %v32
  %v123 = vunpack.c.l.b16 %v33
  %v124 = vunpack.c.l.b16 %v34
  %v125 = vunpack.c.l.b16 %v35
  %v126 = vunpack.c.l.b16 %v36
  %v127 = vunpack.c.l.b16 %v37
  %v128 = vunpack.c.l.b16 %v38
  %v129 = vunpack.c.l.b16 %v39
  %v130 = vunpack.c.l.b16 %v40
  %v131 = vunpack.c.l.b16 %v41
  %v132 = vunpack.c.l.b16 %v42
  %v133 = vunpack.c.l.b16 %v43
  %v134 = vunpack.c.l.b16 %v44
  %v135 = vunpack.c.l.b16 %v45
  %v136 = vunpack.c.l.b16 %v46
  %v137 = vunpack.c.l.b16 %v47
  %v138 = vpack.c.b16 %v107, %v106
  %v139 = vpack.c.b16 %v109, %v108
  %v140 = vpack.c.b16 %v111, %v110
  %v141 = vpack.c.b16 %v113, %v112
  %v142 = vpack.c.b16 %v115, %v114
  %v143 = vpack.c.b16 %v117, %v116
  %v144 = vpack.c.b16 %v119, %v118
  %v145 = vpack.c.b16 %v121, %v120
  %v146 = vpack.c.b16 %v123, %v122
  %v147 = vpack.c.b16 %v125, %v124
  %v148 = vpack.c.b16 %v127, %v126
  %v149 = vpack.c.b16 %v129, %v128
  %v150 = vpack.c.b16 %v131, %v130
  %v151 = vpack.c.b16 %v133, %v132
  %v152 = vpack.c.b16 %v135, %v134
  %v153 = vpack.c.b16 %v137, %v136
  %170 = vmatprep.subr.bf16.mxu0 0
  %171 = vmatpush1.bf16.msra.mxu0 %v145
  %172 = vmatprep.subr.bf16.mxu0 0
  %173 = vmatpush1.bf16.msra.mxu0 %v144
  %174 = vmatprep.subr.bf16.mxu0 0
  %175 = vmatpush1.bf16.msra.mxu0 %v143
  %176 = vmatprep.subr.bf16.mxu0 0
  %177 = vmatpush1.bf16.msra.mxu0 %v142
  %178 = vmatprep.subr.bf16.mxu0 0
  %179 = vmatpush1.bf16.msra.mxu0 %v141
  %180 = vmatprep.subr.bf16.mxu0 0
  %181 = vmatpush1.bf16.msra.mxu0 %v140
  %182 = vmatprep.subr.bf16.mxu0 0
  %183 = vmatpush1.bf16.msra.mxu0 %v139
  %184 = vmatprep.subr.bf16.mxu0 0
  %185 = vmatpush1.bf16.msra.mxu0 %v138
  %186 = vmatprep.subr.bf16.mxu0 0
  %187 = vmatpush2.bf16.msra.mxu0 %v153
  %188 = vmatprep.subr.bf16.mxu0 0
  %189 = vmatpush2.bf16.msra.mxu0 %v152
  %190 = vmatprep.subr.bf16.mxu0 0
  %191 = vmatpush2.bf16.msra.mxu0 %v151
  %192 = vmatprep.subr.bf16.mxu0 0
  %193 = vmatpush2.bf16.msra.mxu0 %v150
  %194 = vmatprep.subr.bf16.mxu0 0
  %195 = vmatpush2.bf16.msra.mxu0 %v149
  %196 = vmatprep.subr.bf16.mxu0 0
  %197 = vmatpush2.bf16.msra.mxu0 %v148
  %198 = vmatprep.subr.bf16.mxu0 0
  %199 = vmatpush2.bf16.msra.mxu0 %v147
  %200 = vmatprep.subr.bf16.mxu0 0
  %201 = vmatpush2.bf16.msra.mxu0 %v146
  %202 = vmatprep.mubr.bf16.mxu0 %v71
  %203 = vmatmul.mubr.bf16.gmra.mxu0 %v64
  %v204 = vpop.f32.mrf.mxu0
  %v205 = vadd.f32 %v48, %v204
  %v206 = vpop.f32.mrf.mxu0
  %v207 = vpop.f32.mrf.mxu0
  %v208 = vpop.f32.mrf.mxu0
  %209 = vdwg.mxu0
  %210 = vst [vmem:[%s3] sm:$0x1] %v205
  // Predicated region
  $region14: #{random_network_forward.1} parent=0 // pred_check
    _
  $region15: #{random_network_forward.1} parent=0 // pred_check_branch
    %212 = sbr.rel (0) target = $region17
  $region16: #{random_network_forward.1} parent=0 // pred_region
    _
  $region17: #{random_network_forward.1} parent=0 // pred_fallthru
    _
  // Predicated region
  $region18: #{random_network_forward.1} parent=0 // pred_check
    _
  $region19: #{random_network_forward.1} parent=0 // pred_check_branch
    %214 = sbr.rel (0) target = $region21
  $region20: #{random_network_forward.1} parent=0 // pred_region
    _
  $region21: #{random_network_forward.1} parent=0 // pred_fallthru
    _

</llo_original>
